<compile_context>
chip_gen: v7x
topology: tpu7x:2x2x1
jax: 0.10.0
libtpu: 0.0.40
codegen_flags: <defaults>
</compile_context>

<pallas_src>
import functools

import jax
import jax.numpy as jnp
from jax.experimental import pallas as pl
from jax.experimental.pallas import tpu as pltpu


# ---------------------------------------------------------------------------
# Fused 2-layer kernel (small graphs: whole problem resident in VMEM).
# ---------------------------------------------------------------------------
def gcn2_fused_kernel(a_ref, x_ref, w1_ref, b1_ref, w2_ref, b2_ref, o_ref):
    # Layer 0: H = relu(A @ (X @ W1) + b1); bf16 MXU inputs, f32 accumulate.
    xw = jnp.dot(x_ref[...], w1_ref[...], preferred_element_type=jnp.float32)
    h = jnp.dot(a_ref[...], xw.astype(jnp.bfloat16),
                preferred_element_type=jnp.float32) + b1_ref[...]
    h = jnp.maximum(h, 0.0)
    # TODO(synk): training-mode dropout (p=0.1) not implemented; eval-mode identity.
    # Layer 1 (lane-dense padded head): O = A @ (H @ W2_pad) + b2 (scalar, SMEM).
    hw = jnp.dot(h.astype(jnp.bfloat16), w2_ref[...],
                 preferred_element_type=jnp.float32)
    o_ref[...] = jnp.dot(a_ref[...], hw.astype(jnp.bfloat16),
                         preferred_element_type=jnp.float32) + b2_ref[0, 0]


def gcn_net_forward_fused(a_norm, x, w1, b1, w2, b2):
    n, f_in = x.shape
    hidden = w1.shape[1]

    a_bf = a_norm.astype(jnp.bfloat16)
    x_bf = x.astype(jnp.bfloat16)
    w1_bf = w1.astype(jnp.bfloat16)
    # Lane-dense output head: pad (HIDDEN, 1) -> (HIDDEN, 128) with zeros.
    w2_pad = _pad_to(w2, (hidden, 128)).astype(jnp.bfloat16)
    b1_f32 = b1.astype(jnp.float32)
    b2_smem = b2.reshape(1, 1).astype(jnp.float32)

    full = lambda shape: pl.BlockSpec(shape, lambda: (0,) * len(shape))
    out = pl.pallas_call(
        gcn2_fused_kernel,
        out_shape=jax.ShapeDtypeStruct((n, 128), jnp.float32),
        in_specs=[
            full((n, n)),                                       # A_norm  (bf16)
            full((n, f_in)),                                    # X       (bf16)
            full((f_in, hidden)),                               # W1      (bf16)
            full((1, hidden)),                                  # b1      (f32 VMEM)
            full((hidden, 128)),                                # W2 pad  (bf16, lane-dense)
            pl.BlockSpec(memory_space=pltpu.MemorySpace.SMEM),  # b2 scalar in SMEM
        ],
        out_specs=full((n, 128)),
    )(a_bf, x_bf, w1_bf, b1_f32, w2_pad, b2_smem)
    return out[:, :1]


# ---------------------------------------------------------------------------
# Row-tiled generic GCN layer (large graphs): out[tile] = A[tile,:] @ (X @ W) + b
# ---------------------------------------------------------------------------
def gcn_layer_kernel(a_ref, x_ref, w_ref, b_ref, o_ref, *, apply_relu):
    xw = jnp.dot(x_ref[...], w_ref[...], preferred_element_type=jnp.float32)
    acc = jnp.dot(a_ref[...], xw.astype(jnp.bfloat16),
                  preferred_element_type=jnp.float32) + b_ref[...]
    if apply_relu:
        acc = jnp.maximum(acc, 0.0)
    o_ref[...] = acc.astype(o_ref.dtype)


def gcn_layer(a, x, w, b, *, apply_relu, out_dtype, tm):
    n = a.shape[0]
    f_in = x.shape[1]
    f_out = w.shape[1]
    tm = min(tm, n)
    kernel = functools.partial(gcn_layer_kernel, apply_relu=apply_relu)
    return pl.pallas_call(
        kernel,
        out_shape=jax.ShapeDtypeStruct((n, f_out), out_dtype),
        grid=(pl.cdiv(n, tm),),
        in_specs=[
            pl.BlockSpec((tm, n), lambda i: (i, 0)),        # A row tile
            pl.BlockSpec((n, f_in), lambda i: (0, 0)),      # full X (or H)
            pl.BlockSpec((f_in, f_out), lambda i: (0, 0)),  # full W (lane-dense)
            pl.BlockSpec((1, f_out), lambda i: (0, 0)),     # bias row
        ],
        out_specs=pl.BlockSpec((tm, f_out), lambda i: (i, 0)),
        compiler_params=pltpu.CompilerParams(
            dimension_semantics=("parallel",)),
    )(a, x, w, b)


def gcn_net_forward_tiled(a_norm, x, w1, b1, w2, b2, *, tm=512):
    """Two row-tiled pallas_calls; hidden padded to 128 lanes so every HBM
    store (H and the output slab) is lane-dense."""
    n = x.shape[0]
    hidden = w1.shape[1]
    hp = _round_up(hidden, 128)

    a_bf = a_norm.astype(jnp.bfloat16)
    x_bf = x.astype(jnp.bfloat16)
    w1_pad = _pad_to(w1, (w1.shape[0], hp)).astype(jnp.bfloat16)
    b1_pad = _pad_to(b1, (1, hp)).astype(jnp.float32)
    w2_pad = _pad_to(w2, (hp, 128)).astype(jnp.bfloat16)
    b2_pad = _pad_to(b2, (1, 128)).astype(jnp.float32)

    h = gcn_layer(a_bf, x_bf, w1_pad, b1_pad,
                  apply_relu=True, out_dtype=jnp.bfloat16, tm=tm)
    # TODO(synk): training-mode dropout (p=0.1) not implemented; eval-mode identity.
    out = gcn_layer(a_bf, h, w2_pad, b2_pad,
                    apply_relu=False, out_dtype=jnp.float32, tm=tm)
    return out[:, :1]


# ---------------------------------------------------------------------------
# Dispatcher + helpers
# ---------------------------------------------------------------------------
def gcn_net_forward(a_norm, x, w1, b1, w2, b2):
    """Fused single kernel when the dense A comfortably fits in VMEM,
    otherwise the row-tiled two-stage path."""
    n, f_in = x.shape
    hidden = w1.shape[1]
    # Rough VMEM footprint of the fused path (bf16 A/X + f32 H + f32 output slab).
    fused_bytes = 2 * n * n + 2 * n * f_in + 4 * n * hidden + 4 * n * 128
    if fused_bytes <= 16 * 1024 * 1024:
        return gcn_net_forward_fused(a_norm, x, w1, b1, w2, b2)
    return gcn_net_forward_tiled(a_norm, x, w1, b1, w2, b2)


def _round_up(v, m):
    return ((v + m - 1) // m) * m


def _pad_to(mat, shape):
    out = jnp.zeros(shape, mat.dtype)
    return out.at[: mat.shape[0], : mat.shape[1]].set(mat)


def build_normalized_adjacency(edge_index, num_nodes):
    """Dense GCN-normalized adjacency (JAX glue, not the hot path)."""
    src = edge_index[0]
    dst = edge_index[1]
    a = jnp.zeros((num_nodes, num_nodes), jnp.float32)
    # A[i, j] = multiplicity of edge j -> i (message flows source -> target)
    a = a.at[dst, src].add(1.0)
    a = a + jnp.eye(num_nodes, dtype=jnp.float32)            # add self-loops
    deg = a.sum(axis=1)                                       # degree incl. self-loop
    dinv = jnp.where(deg > 0, 1.0 / jnp.sqrt(deg), 0.0)
    return dinv[:, None] * a * dinv[None, :]                  # D^-1/2 A_hat D^-1/2


def reference_forward(a_norm, x, w1, b1, w2, b2):
    """Pure-JAX reference with the same bf16-input / f32-accumulate precision."""
    ab = a_norm.astype(jnp.bfloat16)
    xw = jnp.dot(x.astype(jnp.bfloat16), w1.astype(jnp.bfloat16),
                 preferred_element_type=jnp.float32)
    h = jnp.dot(ab, xw.astype(jnp.bfloat16),
                preferred_element_type=jnp.float32) + b1
    h = jnp.maximum(h, 0.0)
    hw = jnp.dot(h.astype(jnp.bfloat16), w2.astype(jnp.bfloat16),
                 preferred_element_type=jnp.float32)
    return jnp.dot(ab, hw.astype(jnp.bfloat16),
                   preferred_element_type=jnp.float32) + b2


if __name__ == "__main__":
    # Small shapes consistent with Net(in_features, hidden_dim, 'gcn', n_layers=2)
    N = 128            # number of graph nodes
    IN_FEATURES = 32
    HIDDEN = 32
    E = 512            # number of edges

    key = jax.random.PRNGKey(0)
    kx, ke, kw1, kb1, kw2 = jax.random.split(key, 5)

    x = jax.random.normal(kx, (N, IN_FEATURES), dtype=jnp.float32)
    edge_index = jax.random.randint(ke, (2, E), 0, N, dtype=jnp.int32)

    # Deterministic parameter init (Glorot-style scaling), GCNConv bias=True.
    w1 = jax.random.normal(kw1, (IN_FEATURES, HIDDEN), jnp.float32) * (
        1.0 / jnp.sqrt(jnp.float32(IN_FEATURES)))
    b1 = 0.1 * jax.random.normal(kb1, (1, HIDDEN), jnp.float32)
    w2 = jax.random.normal(kw2, (HIDDEN, 1), jnp.float32) * (
        1.0 / jnp.sqrt(jnp.float32(HIDDEN)))
    b2 = jnp.array([[0.05]], jnp.float32)

    a_norm = build_normalized_adjacency(edge_index, N)
    ref = reference_forward(a_norm, x, w1, b1, w2, b2)

    # Fused path (what the dispatcher picks at this size).
    out_fused = jax.block_until_ready(gcn_net_forward(a_norm, x, w1, b1, w2, b2))
    assert out_fused.shape == (N, 1)
    assert jnp.allclose(out_fused, ref, atol=1e-2, rtol=1e-2)

    # Row-tiled path with a grid of 2 parallel row tiles (scalability path).
    out_tiled = jax.block_until_ready(
        gcn_net_forward_tiled(a_norm, x, w1, b1, w2, b2, tm=64))
    assert out_tiled.shape == (N, 1)
    assert jnp.allclose(out_tiled, ref, atol=1e-2, rtol=1e-2)

    print("KERNEL_OK")
</pallas_src>

<mosaic_0001>
module attributes {stable_mosaic.version = 11 : i64} {
  func.func @gcn2_fused_kernel(%arg0: memref<128x128xbf16, #tpu.memory_space<vmem>>, %arg1: memref<128x32xbf16, #tpu.memory_space<vmem>>, %arg2: memref<32x32xbf16, #tpu.memory_space<vmem>>, %arg3: memref<1x32xf32, #tpu.memory_space<vmem>>, %arg4: memref<32x128xbf16, #tpu.memory_space<vmem>>, %arg5: memref<1x1xf32, #tpu.memory_space<smem>>, %arg6: memref<128x128xf32, #tpu.memory_space<vmem>>) attributes {dimension_semantics = [], scalar_prefetch = 0 : i64, scratch_operands = 0 : i64, tpu.core_type = #tpu.core_type<tc>} {
    %c0 = arith.constant 0 : index
    %c0_0 = arith.constant 0 : index
    %0 = vector.load %arg1[%c0, %c0_0] : memref<128x32xbf16, #tpu.memory_space<vmem>>, vector<128x32xbf16>
    %c0_1 = arith.constant 0 : index
    %c0_2 = arith.constant 0 : index
    %1 = vector.load %arg2[%c0_1, %c0_2] : memref<32x32xbf16, #tpu.memory_space<vmem>>, vector<32x32xbf16>
    %cst = arith.constant dense<0.000000e+00> : vector<128x32xf32>
    %2 = tpu.matmul %0, %1, %cst {dimension_numbers = #tpu.dot_dimension_numbers<[1], [0], [0], [1], [0, 0, 1, 1], [], []>} : vector<128x32xbf16>, vector<32x32xbf16>, vector<128x32xf32> -> vector<128x32xf32>
    %c0_3 = arith.constant 0 : index
    %c0_4 = arith.constant 0 : index
    %3 = vector.load %arg0[%c0_3, %c0_4] : memref<128x128xbf16, #tpu.memory_space<vmem>>, vector<128x128xbf16>
    %4 = arith.truncf %2 : vector<128x32xf32> to vector<128x32xbf16>
    %cst_5 = arith.constant dense<0.000000e+00> : vector<128x32xf32>
    %5 = tpu.matmul %3, %4, %cst_5 {dimension_numbers = #tpu.dot_dimension_numbers<[1], [0], [0], [1], [0, 0, 1, 1], [], []>} : vector<128x128xbf16>, vector<128x32xbf16>, vector<128x32xf32> -> vector<128x32xf32>
    %c0_6 = arith.constant 0 : index
    %c0_7 = arith.constant 0 : index
    %6 = vector.load %arg3[%c0_6, %c0_7] : memref<1x32xf32, #tpu.memory_space<vmem>>, vector<1x32xf32>
    %7 = vector.broadcast %6 : vector<1x32xf32> to vector<128x32xf32>
    %8 = arith.addf %5, %7 : vector<128x32xf32>
    %cst_8 = arith.constant 0.000000e+00 : f32
    %9 = vector.broadcast %cst_8 : f32 to vector<128x32xf32>
    %10 = arith.maximumf %8, %9 : vector<128x32xf32>
    %11 = arith.truncf %10 : vector<128x32xf32> to vector<128x32xbf16>
    %c0_9 = arith.constant 0 : index
    %c0_10 = arith.constant 0 : index
    %12 = vector.load %arg4[%c0_9, %c0_10] : memref<32x128xbf16, #tpu.memory_space<vmem>>, vector<32x128xbf16>
    %cst_11 = arith.constant dense<0.000000e+00> : vector<128x128xf32>
    %13 = tpu.matmul %11, %12, %cst_11 {dimension_numbers = #tpu.dot_dimension_numbers<[1], [0], [0], [1], [0, 0, 1, 1], [], []>} : vector<128x32xbf16>, vector<32x128xbf16>, vector<128x128xf32> -> vector<128x128xf32>
    %c0_12 = arith.constant 0 : index
    %c0_13 = arith.constant 0 : index
    %14 = vector.load %arg0[%c0_12, %c0_13] : memref<128x128xbf16, #tpu.memory_space<vmem>>, vector<128x128xbf16>
    %15 = arith.truncf %13 : vector<128x128xf32> to vector<128x128xbf16>
    %cst_14 = arith.constant dense<0.000000e+00> : vector<128x128xf32>
    %16 = tpu.matmul %14, %15, %cst_14 {dimension_numbers = #tpu.dot_dimension_numbers<[1], [0], [0], [1], [0, 0, 1, 1], [], []>} : vector<128x128xbf16>, vector<128x128xbf16>, vector<128x128xf32> -> vector<128x128xf32>
    %c0_15 = arith.constant 0 : index
    %c0_16 = arith.constant 0 : index
    %17 = memref.load %arg5[%c0_15, %c0_16] : memref<1x1xf32, #tpu.memory_space<smem>>
    %18 = vector.broadcast %17 : f32 to vector<128x128xf32>
    %19 = arith.addf %16, %18 : vector<128x128xf32>
    %c0_17 = arith.constant 0 : index
    %c0_18 = arith.constant 0 : index
    %20 = vector.load %arg6[%c0_17, %c0_18] : memref<128x128xf32, #tpu.memory_space<vmem>>, vector<128x128xf32>
    tpu.vector_store %arg6[%c0_17, %c0_18], %19 {strides = array<i32>} : memref<128x128xf32, #tpu.memory_space<vmem>>, vector<128x128xf32>,
    return
  }
}

</mosaic_0001>

<llo_original>
// kernel: tpu_custom_call.1
$region0: #{tpu_custom_call.1}
  #allocation0 [shape = 'u32[]', space=smem, size = 0x4, offset = 0x4, fixed_abs, tag = 'smem constant byte address 0x4 - core index']
  #allocation1 [shape = 'u32[144,128]{1,0:T(1,128)}', space=vmem, size = 0x12000, scoped, tag = 'internal scratch']
  #allocation2 [shape = 'f32[1,1]{1,0:T(1,128)S(6)}', space=smem, size = 0x200, scoped, tag = 'scoped memory for tpu_custom_call.1']
  %s0 = inlined_call_operand.vmem [shape: bf16[128,128], index: 0, kind: input, shape index: {}]
  %s1 = inlined_call_operand.vmem [shape: bf16[128,32], index: 1, kind: input, shape index: {}]
  %s2 = inlined_call_operand.vmem [shape: bf16[32,32], index: 2, kind: input, shape index: {}]
  %s3 = inlined_call_operand.vmem [shape: f32[1,32], index: 3, kind: input, shape index: {}]
  %s4 = inlined_call_operand.vmem [shape: bf16[32,128], index: 4, kind: input, shape index: {}]
  %s5 = inlined_call_operand.<no memory space> [shape: f32[1,1], index: 5, kind: input, shape index: {}]
  %s6 = inlined_call_operand.hbm [shape: f32[128,128], index: 6, kind: output, shape index: {}]
  %s7 = sld [smem:[#allocation0]]
  $region34: #{tpu_custom_call.1} parent=0
    _
  %s9 = ssub.s32 1, %s7
  %s10 = scalar_select 0, %s9, %s7
  %11 = sst [smem:[#allocation2]] %s5
  $region1: #{tpu_custom_call.1} parent=0
    #allocation3 [shape = 'u8[65536]{0}', space=vmem, size = 0x10000, scoped, tag = 'output window, operand 0, single buffered']
    #allocation4 [shape = 's32[1]{0}', space=sflag, size = 0x4, scoped, tag = 'scoped memory for tpu_custom_call.1']
    %12 = vsyncpa [#allocation4], 0
    // Predicated region
    $region2: #{tpu_custom_call.1} parent=1 // pred_check
      _
    $region3: #{tpu_custom_call.1} parent=1 // pred_check_branch
      %14 = sbr.rel (0) target = $region5
    $region4: #{tpu_custom_call.1} parent=1 // pred_region
      _
    $region5: #{tpu_custom_call.1} parent=1 // pred_fallthru
      _
    // Predicated region
    $region6: #{tpu_custom_call.1} parent=1 // pred_check
      _
    $region7: #{tpu_custom_call.1} parent=1 // pred_check_branch
      %16 = sbr.rel (0) target = $region9
    $region8: #{tpu_custom_call.1} parent=1 // pred_region
      _
    $region9: #{tpu_custom_call.1} parent=1 // pred_fallthru
      _
    // Predicated region
    $region10: #{tpu_custom_call.1} parent=1 // pred_check
      _
    $region11: #{tpu_custom_call.1} parent=1 // pred_check_branch
      %18 = sbr.rel (0) target = $region13
    $region12: #{tpu_custom_call.1} parent=1 // pred_region
      _
    $region13: #{tpu_custom_call.1} parent=1 // pred_fallthru
      _
    // Predicated region
    $region14: #{tpu_custom_call.1} parent=1 // pred_check
      _
    $region15: #{tpu_custom_call.1} parent=1 // pred_check_branch
      %20 = sbr.rel (0) target = $region17
    $region16: #{tpu_custom_call.1} parent=1 // pred_region
      _
    $region17: #{tpu_custom_call.1} parent=1 // pred_fallthru
      _
    // Predicated region
    $region18: #{tpu_custom_call.1} parent=1 // pred_check
      _
    $region19: #{tpu_custom_call.1} parent=1 // pred_check_branch
      %22 = sbr.rel (0) target = $region21
    $region20: #{tpu_custom_call.1} parent=1 // pred_region
      _
    $region21: #{tpu_custom_call.1} parent=1 // pred_fallthru
      _
    // Predicated region
    $region22: #{tpu_custom_call.1} parent=1 // pred_check
      _
    $region23: #{tpu_custom_call.1} parent=1 // pred_check_branch
      %24 = sbr.rel (0) target = $region25
    $region24: #{tpu_custom_call.1} parent=1 // pred_region
      _
    $region25: #{tpu_custom_call.1} parent=1 // pred_fallthru
      _
    %v26 = vld [vmem:[%s1] sm:$0xf]
    %v27 = vld [vmem:[%s1 + $0x4] sm:$0xf]
    %v28 = vld [vmem:[%s1 + $0x8] sm:$0xf]
    %v29 = vld [vmem:[%s1 + $0xc] sm:$0xf]
    %v30 = vld [vmem:[%s1 + $0x10] sm:$0xf]
    %v31 = vld [vmem:[%s1 + $0x14] sm:$0xf]
    %v32 = vld [vmem:[%s1 + $0x18] sm:$0xf]
    %v33 = vld [vmem:[%s1 + $0x1c] sm:$0xf]
    %v34 = vld [vmem:[%s1 + $0x20] sm:$0xf]
    %v35 = vld [vmem:[%s1 + $0x24] sm:$0xf]
    %v36 = vld [vmem:[%s1 + $0x28] sm:$0xf]
    %v37 = vld [vmem:[%s1 + $0x2c] sm:$0xf]
    %v38 = vld [vmem:[%s1 + $0x30] sm:$0xf]
    %v39 = vld [vmem:[%s1 + $0x34] sm:$0xf]
    %v40 = vld [vmem:[%s1 + $0x38] sm:$0xf]
    %v41 = vld [vmem:[%s1 + $0x3c] sm:$0xf]
    %v42 = vld [vmem:[%s2] sm:$0xf]
    %v43 = vld [vmem:[%s2 + $0x4] sm:$0xf]
    %v44 = vld [vmem:[%s2 + $0x8] sm:$0xf]
    %v45 = vld [vmem:[%s2 + $0xc] sm:$0xf]
    %v62 = vunpack.c.l.b16 %v26
    %v63 = vunpack.c.l.b16 %v27
    %v64 = vunpack.c.l.b16 %v28
    %v65 = vunpack.c.l.b16 %v29
    %v66 = vunpack.c.l.b16 %v30
    %v67 = vunpack.c.l.b16 %v31
    %v68 = vunpack.c.l.b16 %v32
    %v69 = vunpack.c.l.b16 %v33
    %v70 = vunpack.c.l.b16 %v34
    %v71 = vunpack.c.l.b16 %v35
    %v72 = vunpack.c.l.b16 %v36
    %v73 = vunpack.c.l.b16 %v37
    %v74 = vunpack.c.l.b16 %v38
    %v75 = vunpack.c.l.b16 %v39
    %v76 = vunpack.c.l.b16 %v40
    %v77 = vunpack.c.l.b16 %v41
    %v78 = vpack.c.b16 %v63, %v62
    %v79 = vpack.c.b16 %v65, %v64
    %v80 = vpack.c.b16 %v67, %v66
    %v81 = vpack.c.b16 %v69, %v68
    %v82 = vpack.c.b16 %v71, %v70
    %v83 = vpack.c.b16 %v73, %v72
    %v84 = vpack.c.b16 %v75, %v74
    %v85 = vpack.c.b16 %v77, %v76
    %v90 = vunpack.c.l.b16 %v42
    %v91 = vunpack.c.l.b16 %v43
    %v92 = vunpack.c.l.b16 %v44
    %v93 = vunpack.c.l.b16 %v45
    %v94 = vpack.c.b16 %v91, %v90
    %v95 = vpack.c.b16 %v93, %v92
    %vm98 = vcmask 261120
    %v100 = vsel %vm98, %v78, 0
    %v103 = vsel %vm98, %v79, 0
    %v106 = vsel %vm98, %v80, 0
    %v109 = vsel %vm98, %v81, 0
    %v112 = vsel %vm98, %v82, 0
    %v115 = vsel %vm98, %v83, 0
    %v118 = vsel %vm98, %v84, 0
    %v121 = vsel %vm98, %v85, 0
    %123 = vmatprep.subr.bf16.mxu0 0
    %124 = vmatpush1.bf16.msra.mxu0 %v94
    %125 = vmatprep.subr.bf16.mxu0 0
    %126 = vmatpush1.bf16.msra.mxu0 %v95
    %127 = vmatprep.subr.bf16.mxu0 0
    %128 = vmatpush1.bf16.msra.mxu0 0
    %129 = vmatprep.subr.bf16.mxu0 0
    %130 = vmatpush1.bf16.msra.mxu0 0
    %131 = vmatprep.subr.bf16.mxu0 0
    %132 = vmatpush1.bf16.msra.mxu0 0
    %133 = vmatprep.subr.bf16.mxu0 0
    %134 = vmatpush1.bf16.msra.mxu0 0
    %135 = vmatprep.subr.bf16.mxu0 0
    %136 = vmatpush1.bf16.msra.mxu0 0
    %137 = vmatprep.subr.bf16.mxu0 0
    %138 = vmatpush1.bf16.msra.mxu0 0
    %139 = vmatprep.subr.bf16.mxu0 0
    %140 = vmatpush1.bf16.msra.mxu0 0
    %141 = vmatprep.subr.bf16.mxu0 0
    %142 = vmatpush1.bf16.msra.mxu0 0
    %143 = vmatprep.subr.bf16.mxu0 0
    %144 = vmatpush1.bf16.msra.mxu0 0
    %145 = vmatprep.subr.bf16.mxu0 0
    %146 = vmatpush1.bf16.msra.mxu0 0
    %147 = vmatprep.subr.bf16.mxu0 0
    %148 = vmatpush1.bf16.msra.mxu0 0
    %149 = vmatprep.subr.bf16.mxu0 0
    %150 = vmatpush1.bf16.msra.mxu0 0
    %151 = vmatprep.subr.bf16.mxu0 0
    %152 = vmatpush1.bf16.msra.mxu0 0
    %153 = vmatprep.subr.bf16.mxu0 0
    %154 = vmatpush1.bf16.msra.mxu0 0
    %155 = vmatprep.mubr.bf16.mxu0 0
    %156 = vmatmul.mubr.bf16.gmra.mrb[0].mxu0 %v100
    %v157 = vpop.f32.mrb[0].mxu0
    %v158 = vadd.f32 0.0, %v157
    %v159 = vpop.f32.mrb[0].mxu0
    %v160 = vpop.f32.mrb[0].mxu0
    %v161 = vadd.f32 0.0, %v160
    %v162 = vpop.f32.mrb[0].mxu0
    %163 = vmatprep.mubr.bf16.mxu0 0
    %164 = vmatmul.mubr.bf16.gmra.mrb[0].mxu0 %v103
    %v165 = vpop.f32.mrb[0].mxu0
    %v166 = vadd.f32 0.0, %v165
    %v167 = vpop.f32.mrb[0].mxu0
    %v168 = vpop.f32.mrb[0].mxu0
    %v169 = vadd.f32 0.0, %v168
    %v170 = vpop.f32.mrb[0].mxu0
    %171 = vmatprep.mubr.bf16.mxu0 0
    %172 = vmatmul.mubr.bf16.gmra.mrb[0].mxu0 %v106
    %v173 = vpop.f32.mrb[0].mxu0
    %v174 = vadd.f32 0.0, %v173
    %v175 = vpop.f32.mrb[0].mxu0
    %v176 = vpop.f32.mrb[0].mxu0
    %v177 = vadd.f32 0.0, %v176
    %v178 = vpop.f32.mrb[0].mxu0
    %179 = vmatprep.mubr.bf16.mxu0 0
    %180 = vmatmul.mubr.bf16.gmra.mrb[0].mxu0 %v109
    %v181 = vpop.f32.mrb[0].mxu0
    %v182 = vadd.f32 0.0, %v181
    %v183 = vpop.f32.mrb[0].mxu0
    %v184 = vpop.f32.mrb[0].mxu0
    %v185 = vadd.f32 0.0, %v184
    %v186 = vpop.f32.mrb[0].mxu0
    %187 = vmatprep.mubr.bf16.mxu0 0
    %188 = vmatmul.mubr.bf16.gmra.mrb[0].mxu0 %v112
    %v189 = vpop.f32.mrb[0].mxu0
    %v190 = vadd.f32 0.0, %v189
    %v191 = vpop.f32.mrb[0].mxu0
    %v192 = vpop.f32.mrb[0].mxu0
    %v193 = vadd.f32 0.0, %v192
    %v194 = vpop.f32.mrb[0].mxu0
    %195 = vmatprep.mubr.bf16.mxu0 0
    %196 = vmatmul.mubr.bf16.gmra.mrb[0].mxu0 %v115
    %v197 = vpop.f32.mrb[0].mxu0
    %v198 = vadd.f32 0.0, %v197
    %v199 = vpop.f32.mrb[0].mxu0
    %v200 = vpop.f32.mrb[0].mxu0
    %v201 = vadd.f32 0.0, %v200
    %v202 = vpop.f32.mrb[0].mxu0
    %203 = vmatprep.mubr.bf16.mxu0 0
    %204 = vmatmul.mubr.bf16.gmra.mrb[0].mxu0 %v118
    %v205 = vpop.f32.mrb[0].mxu0
    %v206 = vadd.f32 0.0, %v205
    %v207 = vpop.f32.mrb[0].mxu0
    %v208 = vpop.f32.mrb[0].mxu0
    %v209 = vadd.f32 0.0, %v208
    %v210 = vpop.f32.mrb[0].mxu0
    %211 = vmatprep.mubr.bf16.mxu0 0
    %212 = vmatmul.mubr.bf16.gmra.mrb[0].mxu0 %v121
    %v213 = vpop.f32.mrb[0].mxu0
    %v214 = vadd.f32 0.0, %v213
    %v215 = vpop.f32.mrb[0].mxu0
    %v216 = vpop.f32.mrb[0].mxu0
    %v217 = vadd.f32 0.0, %v216
    %v218 = vpop.f32.mrb[0].mxu0
    %219 = vdwg.mxu0
    %v220 = vld [vmem:[%s0] sm:$0xf]
    %v221 = vld [vmem:[%s0 + $0x4] sm:$0xf]
    %v222 = vld [vmem:[%s0 + $0x8] sm:$0xf]
    %v223 = vld [vmem:[%s0 + $0xc] sm:$0xf]
    %v224 = vld [vmem:[%s0 + $0x10] sm:$0xf]
    %v225 = vld [vmem:[%s0 + $0x14] sm:$0xf]
    %v226 = vld [vmem:[%s0 + $0x18] sm:$0xf]
    %v227 = vld [vmem:[%s0 + $0x1c] sm:$0xf]
    %v228 = vld [vmem:[%s0 + $0x20] sm:$0xf]
    %v229 = vld [vmem:[%s0 + $0x24] sm:$0xf]
    %v230 = vld [vmem:[%s0 + $0x28] sm:$0xf]
    %v231 = vld [vmem:[%s0 + $0x2c] sm:$0xf]
    %v232 = vld [vmem:[%s0 + $0x30] sm:$0xf]
    %v233 = vld [vmem:[%s0 + $0x34] sm:$0xf]
    %v234 = vld [vmem:[%s0 + $0x38] sm:$0xf]
    %v235 = vld [vmem:[%s0 + $0x3c] sm:$0xf]
    %v236 = vpack.c.bf16 %v161, %v158
    %v237 = vpack.c.bf16 %v169, %v166
    %v238 = vpack.c.bf16 %v177, %v174
    %v239 = vpack.c.bf16 %v185, %v182
    %v240 = vpack.c.bf16 %v193, %v190
    %v241 = vpack.c.bf16 %v201, %v198
    %v242 = vpack.c.bf16 %v209, %v206
    %v243 = vpack.c.bf16 %v217, %v214
    %v244 = vld [vmem:[%s3] sm:$0x1]
    %v246 = vlaneseq
    %v247 = vshrl.u32 %v246, 7
    %v248 = vsub.s32 0, %v247
    %v249 = vrot.slane %v244, %v248
    %v267 = vunpack.c.l.b16 %v220
    %v268 = vunpack.c.l.b16 %v221
    %v269 = vunpack.c.l.b16 %v222
    %v270 = vunpack.c.l.b16 %v223
    %v271 = vunpack.c.l.b16 %v224
    %v272 = vunpack.c.l.b16 %v225
    %v273 = vunpack.c.l.b16 %v226
    %v274 = vunpack.c.l.b16 %v227
    %v275 = vunpack.c.l.b16 %v228
    %v276 = vunpack.c.l.b16 %v229
    %v277 = vunpack.c.l.b16 %v230
    %v278 = vunpack.c.l.b16 %v231
    %v279 = vunpack.c.l.b16 %v232
    %v280 = vunpack.c.l.b16 %v233
    %v281 = vunpack.c.l.b16 %v234
    %v282 = vunpack.c.l.b16 %v235
    %v283 = vpack.c.b16 %v268, %v267
    %v284 = vpack.c.b16 %v270, %v269
    %v285 = vpack.c.b16 %v272, %v271
    %v286 = vpack.c.b16 %v274, %v273
    %v287 = vpack.c.b16 %v276, %v275
    %v288 = vpack.c.b16 %v278, %v277
    %v289 = vpack.c.b16 %v280, %v279
    %v290 = vpack.c.b16 %v282, %v281
    %299 = vmatprep.subr.bf16.mxu0 0
    %300 = vmatpush1.bf16.msra.mxu0 %v236
    %301 = vmatprep.subr.bf16.mxu0 0
    %302 = vmatpush1.bf16.msra.mxu0 %v237
    %303 = vmatprep.subr.bf16.mxu0 0
    %304 = vmatpush1.bf16.msra.mxu0 %v238
    %305 = vmatprep.subr.bf16.mxu0 0
    %306 = vmatpush1.bf16.msra.mxu0 %v239
    %307 = vmatprep.subr.bf16.mxu0 0
    %308 = vmatpush1.bf16.msra.mxu0 %v240
    %309 = vmatprep.subr.bf16.mxu0 0
    %310 = vmatpush1.bf16.msra.mxu0 %v241
    %311 = vmatprep.subr.bf16.mxu0 0
    %312 = vmatpush1.bf16.msra.mxu0 %v242
    %313 = vmatprep.subr.bf16.mxu0 0
    %314 = vmatpush1.bf16.msra.mxu0 %v243
    %315 = vmatprep.subr.bf16.mxu0 0
    %316 = vmatpush1.bf16.msra.mxu0 0
    %317 = vmatprep.subr.bf16.mxu0 0
    %318 = vmatpush1.bf16.msra.mxu0 0
    %319 = vmatprep.subr.bf16.mxu0 0
    %320 = vmatpush1.bf16.msra.mxu0 0
    %321 = vmatprep.subr.bf16.mxu0 0
    %322 = vmatpush1.bf16.msra.mxu0 0
    %323 = vmatprep.subr.bf16.mxu0 0
    %324 = vmatpush1.bf16.msra.mxu0 0
    %325 = vmatprep.subr.bf16.mxu0 0
    %326 = vmatpush1.bf16.msra.mxu0 0
    %327 = vmatprep.subr.bf16.mxu0 0
    %328 = vmatpush1.bf16.msra.mxu0 0
    %329 = vmatprep.subr.bf16.mxu0 0
    %330 = vmatpush1.bf16.msra.mxu0 0
    %331 = vmatprep.mubr.bf16.mxu0 0
    %332 = vmatmul.mubr.bf16.gmra.mrb[0].mxu0 %v283
    %v333 = vpop.f32.mrb[0].mxu0
    %v334 = vadd.f32 %v249, %v333
    %v335 = vpop.f32.mrb[0].mxu0
    %v336 = vpop.f32.mrb[0].mxu0
    %v337 = vadd.f32 %v249, %v336
    %v338 = vpop.f32.mrb[0].mxu0
    %339 = vmatprep.mubr.bf16.mxu0 0
    %340 = vmatmul.mubr.bf16.gmra.mrb[0].mxu0 %v284
    %v341 = vpop.f32.mrb[0].mxu0
    %v342 = vadd.f32 %v249, %v341
    %v343 = vpop.f32.mrb[0].mxu0
    %v344 = vpop.f32.mrb[0].mxu0
    %v345 = vadd.f32 %v249, %v344
    %v346 = vpop.f32.mrb[0].mxu0
    %347 = vmatprep.mubr.bf16.mxu0 0
    %348 = vmatmul.mubr.bf16.gmra.mrb[0].mxu0 %v285
    %v349 = vpop.f32.mrb[0].mxu0
    %v350 = vadd.f32 %v249, %v349
    %v351 = vpop.f32.mrb[0].mxu0
    %v352 = vpop.f32.mrb[0].mxu0
    %v353 = vadd.f32 %v249, %v352
    %v354 = vpop.f32.mrb[0].mxu0
    %355 = vmatprep.mubr.bf16.mxu0 0
    %356 = vmatmul.mubr.bf16.gmra.mrb[0].mxu0 %v286
    %v357 = vpop.f32.mrb[0].mxu0
    %v358 = vadd.f32 %v249, %v357
    %v359 = vpop.f32.mrb[0].mxu0
    %v360 = vpop.f32.mrb[0].mxu0
    %v361 = vadd.f32 %v249, %v360
    %v362 = vpop.f32.mrb[0].mxu0
    %363 = vmatprep.mubr.bf16.mxu0 0
    %364 = vmatmul.mubr.bf16.gmra.mrb[0].mxu0 %v287
    %v365 = vpop.f32.mrb[0].mxu0
    %v366 = vadd.f32 %v249, %v365
    %v367 = vpop.f32.mrb[0].mxu0
    %v368 = vpop.f32.mrb[0].mxu0
    %v369 = vadd.f32 %v249, %v368
    %v370 = vpop.f32.mrb[0].mxu0
    %371 = vmatprep.mubr.bf16.mxu0 0
    %372 = vmatmul.mubr.bf16.gmra.mrb[0].mxu0 %v288
    %v373 = vpop.f32.mrb[0].mxu0
    %v374 = vadd.f32 %v249, %v373
    %v375 = vpop.f32.mrb[0].mxu0
    %v376 = vpop.f32.mrb[0].mxu0
    %v377 = vadd.f32 %v249, %v376
    %v378 = vpop.f32.mrb[0].mxu0
    %379 = vmatprep.mubr.bf16.mxu0 0
    %380 = vmatmul.mubr.bf16.gmra.mrb[0].mxu0 %v289
    %v381 = vpop.f32.mrb[0].mxu0
    %v382 = vadd.f32 %v249, %v381
    %v383 = vpop.f32.mrb[0].mxu0
    %v384 = vpop.f32.mrb[0].mxu0
    %v385 = vadd.f32 %v249, %v384
    %v386 = vpop.f32.mrb[0].mxu0
    %387 = vmatprep.mubr.bf16.mxu0 0
    %388 = vmatmul.mubr.bf16.gmra.mrb[0].mxu0 %v290
    %v389 = vpop.f32.mrb[0].mxu0
    %v390 = vadd.f32 %v249, %v389
    %v391 = vpop.f32.mrb[0].mxu0
    %v392 = vpop.f32.mrb[0].mxu0
    %v393 = vadd.f32 %v249, %v392
    %v394 = vpop.f32.mrb[0].mxu0
    %395 = vdwg.mxu0
    %v396 = vmax.f32 %v334, 0.0
    %v397 = vmax.f32 %v337, 0.0
    %v398 = vmax.f32 %v342, 0.0
    %v399 = vmax.f32 %v345, 0.0
    %v400 = vmax.f32 %v350, 0.0
    %v401 = vmax.f32 %v353, 0.0
    %v402 = vmax.f32 %v358, 0.0
    %v403 = vmax.f32 %v361, 0.0
    %v404 = vmax.f32 %v366, 0.0
    %v405 = vmax.f32 %v369, 0.0
    %v406 = vmax.f32 %v374, 0.0
    %v407 = vmax.f32 %v377, 0.0
    %v408 = vmax.f32 %v382, 0.0
    %v409 = vmax.f32 %v385, 0.0
    %v410 = vmax.f32 %v390, 0.0
    %v411 = vmax.f32 %v393, 0.0
    %v412 = vpack.c.bf16 %v397, %v396
    %v413 = vpack.c.bf16 %v399, %v398
    %v414 = vpack.c.bf16 %v401, %v400
    %v415 = vpack.c.bf16 %v403, %v402
    %v416 = vpack.c.bf16 %v405, %v404
    %v417 = vpack.c.bf16 %v407, %v406
    %v418 = vpack.c.bf16 %v409, %v408
    %v419 = vpack.c.bf16 %v411, %v410
    %v420 = vld [vmem:[%s4] sm:$0xf]
    %v421 = vld [vmem:[%s4 + $0x4] sm:$0xf]
    %v422 = vld [vmem:[%s4 + $0x8] sm:$0xf]
    %v423 = vld [vmem:[%s4 + $0xc] sm:$0xf]
    %v428 = vunpack.c.l.b16 %v420
    %v429 = vunpack.c.l.b16 %v421
    %v430 = vunpack.c.l.b16 %v422
    %v431 = vunpack.c.l.b16 %v423
    %v432 = vpack.c.b16 %v429, %v428
    %v433 = vpack.c.b16 %v431, %v430
    %v437 = vsel %vm98, %v412, 0
    %v440 = vsel %vm98, %v413, 0
    %v443 = vsel %vm98, %v414, 0
    %v446 = vsel %vm98, %v415, 0
    %v449 = vsel %vm98, %v416, 0
    %v452 = vsel %vm98, %v417, 0
    %v455 = vsel %vm98, %v418, 0
    %v458 = vsel %vm98, %v419, 0
    %460 = vmatprep.subr.bf16.mxu0 0
    %461 = vmatpush1.bf16.msra.mxu0 %v432
    %462 = vmatprep.subr.bf16.mxu0 0
    %463 = vmatpush1.bf16.msra.mxu0 %v433
    %464 = vmatprep.subr.bf16.mxu0 0
    %465 = vmatpush1.bf16.msra.mxu0 0
    %466 = vmatprep.subr.bf16.mxu0 0
    %467 = vmatpush1.bf16.msra.mxu0 0
    %468 = vmatprep.subr.bf16.mxu0 0
    %469 = vmatpush1.bf16.msra.mxu0 0
    %470 = vmatprep.subr.bf16.mxu0 0
    %471 = vmatpush1.bf16.msra.mxu0 0
    %472 = vmatprep.subr.bf16.mxu0 0
    %473 = vmatpush1.bf16.msra.mxu0 0
    %474 = vmatprep.subr.bf16.mxu0 0
    %475 = vmatpush1.bf16.msra.mxu0 0
    %476 = vmatprep.subr.bf16.mxu0 0
    %477 = vmatpush1.bf16.msra.mxu0 0
    %478 = vmatprep.subr.bf16.mxu0 0
    %479 = vmatpush1.bf16.msra.mxu0 0
    %480 = vmatprep.subr.bf16.mxu0 0
    %481 = vmatpush1.bf16.msra.mxu0 0
    %482 = vmatprep.subr.bf16.mxu0 0
    %483 = vmatpush1.bf16.msra.mxu0 0
    %484 = vmatprep.subr.bf16.mxu0 0
    %485 = vmatpush1.bf16.msra.mxu0 0
    %486 = vmatprep.subr.bf16.mxu0 0
    %487 = vmatpush1.bf16.msra.mxu0 0
    %488 = vmatprep.subr.bf16.mxu0 0
    %489 = vmatpush1.bf16.msra.mxu0 0
    %490 = vmatprep.subr.bf16.mxu0 0
    %491 = vmatpush1.bf16.msra.mxu0 0
    %492 = vmatprep.mubr.bf16.mxu0 0
    %493 = vmatmul.mubr.bf16.gmra.mrb[0].mxu0 %v437
    %v494 = vpop.f32.mrb[0].mxu0
    %v495 = vadd.f32 0.0, %v494
    %v496 = vpop.f32.mrb[0].mxu0
    %v497 = vpop.f32.mrb[0].mxu0
    %v498 = vadd.f32 0.0, %v497
    %v499 = vpop.f32.mrb[0].mxu0
    %500 = vmatprep.mubr.bf16.mxu0 0
    %501 = vmatmul.mubr.bf16.gmra.mrb[0].mxu0 %v440
    %v502 = vpop.f32.mrb[0].mxu0
    %v503 = vadd.f32 0.0, %v502
    %v504 = vpop.f32.mrb[0].mxu0
    %v505 = vpop.f32.mrb[0].mxu0
    %v506 = vadd.f32 0.0, %v505
    %v507 = vpop.f32.mrb[0].mxu0
    %508 = vmatprep.mubr.bf16.mxu0 0
    %509 = vmatmul.mubr.bf16.gmra.mrb[0].mxu0 %v443
    %v510 = vpop.f32.mrb[0].mxu0
    %v511 = vadd.f32 0.0, %v510
    %v512 = vpop.f32.mrb[0].mxu0
    %v513 = vpop.f32.mrb[0].mxu0
    %v514 = vadd.f32 0.0, %v513
    %v515 = vpop.f32.mrb[0].mxu0
    %516 = vmatprep.mubr.bf16.mxu0 0
    %517 = vmatmul.mubr.bf16.gmra.mrb[0].mxu0 %v446
    %v518 = vpop.f32.mrb[0].mxu0
    %v519 = vadd.f32 0.0, %v518
    %v520 = vpop.f32.mrb[0].mxu0
    %v521 = vpop.f32.mrb[0].mxu0
    %v522 = vadd.f32 0.0, %v521
    %v523 = vpop.f32.mrb[0].mxu0
    %524 = vmatprep.mubr.bf16.mxu0 0
    %525 = vmatmul.mubr.bf16.gmra.mrb[0].mxu0 %v449
    %v526 = vpop.f32.mrb[0].mxu0
    %v527 = vadd.f32 0.0, %v526
    %v528 = vpop.f32.mrb[0].mxu0
    %v529 = vpop.f32.mrb[0].mxu0
    %v530 = vadd.f32 0.0, %v529
    %v531 = vpop.f32.mrb[0].mxu0
    %532 = vmatprep.mubr.bf16.mxu0 0
    %533 = vmatmul.mubr.bf16.gmra.mrb[0].mxu0 %v452
    %v534 = vpop.f32.mrb[0].mxu0
    %v535 = vadd.f32 0.0, %v534
    %v536 = vpop.f32.mrb[0].mxu0
    %v537 = vpop.f32.mrb[0].mxu0
    %v538 = vadd.f32 0.0, %v537
    %v539 = vpop.f32.mrb[0].mxu0
    %540 = vmatprep.mubr.bf16.mxu0 0
    %541 = vmatmul.mubr.bf16.gmra.mrb[0].mxu0 %v455
    %v542 = vpop.f32.mrb[0].mxu0
    %v543 = vadd.f32 0.0, %v542
    %v544 = vpop.f32.mrb[0].mxu0
    %v545 = vpop.f32.mrb[0].mxu0
    %v546 = vadd.f32 0.0, %v545
    %v547 = vpop.f32.mrb[0].mxu0
    %548 = vmatprep.mubr.bf16.mxu0 0
    %549 = vmatmul.mubr.bf16.gmra.mrb[0].mxu0 %v458
    %v550 = vpop.f32.mrb[0].mxu0
    %v551 = vadd.f32 0.0, %v550
    %v552 = vpop.f32.mrb[0].mxu0
    %v553 = vpop.f32.mrb[0].mxu0
    %v554 = vadd.f32 0.0, %v553
    %v555 = vpop.f32.mrb[0].mxu0
    %556 = vdwg.mxu0
    %v557 = vpack.c.bf16 %v498, %v495
    %v558 = vpack.c.bf16 %v506, %v503
    %v559 = vpack.c.bf16 %v514, %v511
    %v560 = vpack.c.bf16 %v522, %v519
    %v561 = vpack.c.bf16 %v530, %v527
    %v562 = vpack.c.bf16 %v538, %v535
    %v563 = vpack.c.bf16 %v546, %v543
    %v564 = vpack.c.bf16 %v554, %v551
    %s565 = sld [smem:[#allocation2]]
    %v566 = vstv %s565
    %567 = vmatprep.subr.bf16.mxu0 0
    %568 = vmatpush1.bf16.msra.mxu0 %v557
    %569 = vmatprep.subr.bf16.mxu0 0
    %570 = vmatpush1.bf16.msra.mxu0 %v558
    %571 = vmatprep.subr.bf16.mxu0 0
    %572 = vmatpush1.bf16.msra.mxu0 %v559
    %573 = vmatprep.subr.bf16.mxu0 0
    %574 = vmatpush1.bf16.msra.mxu0 %v560
    %575 = vmatprep.subr.bf16.mxu0 0
    %576 = vmatpush1.bf16.msra.mxu0 %v561
    %577 = vmatprep.subr.bf16.mxu0 0
    %578 = vmatpush1.bf16.msra.mxu0 %v562
    %579 = vmatprep.subr.bf16.mxu0 0
    %580 = vmatpush1.bf16.msra.mxu0 %v563
    %581 = vmatprep.subr.bf16.mxu0 0
    %582 = vmatpush1.bf16.msra.mxu0 %v564
    %583 = vmatprep.subr.bf16.mxu0 0
    %584 = vmatpush1.bf16.msra.mxu0 0
    %585 = vmatprep.subr.bf16.mxu0 0
    %586 = vmatpush1.bf16.msra.mxu0 0
    %587 = vmatprep.subr.bf16.mxu0 0
    %588 = vmatpush1.bf16.msra.mxu0 0
    %589 = vmatprep.subr.bf16.mxu0 0
    %590 = vmatpush1.bf16.msra.mxu0 0
    %591 = vmatprep.subr.bf16.mxu0 0
    %592 = vmatpush1.bf16.msra.mxu0 0
    %593 = vmatprep.subr.bf16.mxu0 0
    %594 = vmatpush1.bf16.msra.mxu0 0
    %595 = vmatprep.subr.bf16.mxu0 0
    %596 = vmatpush1.bf16.msra.mxu0 0
    %597 = vmatprep.subr.bf16.mxu0 0
    %598 = vmatpush1.bf16.msra.mxu0 0
    %599 = vmatprep.mubr.bf16.mxu0 0
    %600 = vmatmul.mubr.bf16.gmra.mrb[0].mxu0 %v283
    %v601 = vpop.f32.mrb[0].mxu0
    %v602 = vadd.f32 %v566, %v601
    %v603 = vpop.f32.mrb[0].mxu0
    %v604 = vpop.f32.mrb[0].mxu0
    %v605 = vadd.f32 %v566, %v604
    %v606 = vpop.f32.mrb[0].mxu0
    %607 = vmatprep.mubr.bf16.mxu0 0
    %608 = vmatmul.mubr.bf16.gmra.mrb[0].mxu0 %v284
    %v609 = vpop.f32.mrb[0].mxu0
    %v610 = vadd.f32 %v566, %v609
    %v611 = vpop.f32.mrb[0].mxu0
    %v612 = vpop.f32.mrb[0].mxu0
    %v613 = vadd.f32 %v566, %v612
    %v614 = vpop.f32.mrb[0].mxu0
    %615 = vmatprep.mubr.bf16.mxu0 0
    %616 = vmatmul.mubr.bf16.gmra.mrb[0].mxu0 %v285
    %v617 = vpop.f32.mrb[0].mxu0
    %v618 = vadd.f32 %v566, %v617
    %v619 = vpop.f32.mrb[0].mxu0
    %v620 = vpop.f32.mrb[0].mxu0
    %v621 = vadd.f32 %v566, %v620
    %v622 = vpop.f32.mrb[0].mxu0
    %623 = vmatprep.mubr.bf16.mxu0 0
    %624 = vmatmul.mubr.bf16.gmra.mrb[0].mxu0 %v286
    %v625 = vpop.f32.mrb[0].mxu0
    %v626 = vadd.f32 %v566, %v625
    %v627 = vpop.f32.mrb[0].mxu0
    %v628 = vpop.f32.mrb[0].mxu0
    %v629 = vadd.f32 %v566, %v628
    %v630 = vpop.f32.mrb[0].mxu0
    %631 = vmatprep.mubr.bf16.mxu0 0
    %632 = vmatmul.mubr.bf16.gmra.mrb[0].mxu0 %v287
    %v633 = vpop.f32.mrb[0].mxu0
    %v634 = vadd.f32 %v566, %v633
    %v635 = vpop.f32.mrb[0].mxu0
    %v636 = vpop.f32.mrb[0].mxu0
    %v637 = vadd.f32 %v566, %v636
    %v638 = vpop.f32.mrb[0].mxu0
    %639 = vmatprep.mubr.bf16.mxu0 0
    %640 = vmatmul.mubr.bf16.gmra.mrb[0].mxu0 %v288
    %v641 = vpop.f32.mrb[0].mxu0
    %v642 = vadd.f32 %v566, %v641
    %v643 = vpop.f32.mrb[0].mxu0
    %v644 = vpop.f32.mrb[0].mxu0
    %v645 = vadd.f32 %v566, %v644
    %v646 = vpop.f32.mrb[0].mxu0
    %647 = vmatprep.mubr.bf16.mxu0 0
    %648 = vmatmul.mubr.bf16.gmra.mrb[0].mxu0 %v289
    %v649 = vpop.f32.mrb[0].mxu0
    %v650 = vadd.f32 %v566, %v649
    %v651 = vpop.f32.mrb[0].mxu0
    %v652 = vpop.f32.mrb[0].mxu0
    %v653 = vadd.f32 %v566, %v652
    %v654 = vpop.f32.mrb[0].mxu0
    %655 = vmatprep.mubr.bf16.mxu0 0
    %656 = vmatmul.mubr.bf16.gmra.mrb[0].mxu0 %v290
    %v657 = vpop.f32.mrb[0].mxu0
    %v658 = vadd.f32 %v566, %v657
    %v659 = vpop.f32.mrb[0].mxu0
    %v660 = vpop.f32.mrb[0].mxu0
    %v661 = vadd.f32 %v566, %v660
    %v662 = vpop.f32.mrb[0].mxu0
    %663 = vdwg.mxu0
    %664 = vst [vmem:[#allocation3] sm:$0xff] %v602
    %665 = vst [vmem:[#allocation3 + $0x8] sm:$0xff] %v605
    %666 = vst [vmem:[#allocation3 + $0x10] sm:$0xff] %v610
    %667 = vst [vmem:[#allocation3 + $0x18] sm:$0xff] %v613
    %668 = vst [vmem:[#allocation3 + $0x20] sm:$0xff] %v618
    %669 = vst [vmem:[#allocation3 + $0x28] sm:$0xff] %v621
    %670 = vst [vmem:[#allocation3 + $0x30] sm:$0xff] %v626
    %671 = vst [vmem:[#allocation3 + $0x38] sm:$0xff] %v629
    %672 = vst [vmem:[#allocation3 + $0x40] sm:$0xff] %v634
    %673 = vst [vmem:[#allocation3 + $0x48] sm:$0xff] %v637
    %674 = vst [vmem:[#allocation3 + $0x50] sm:$0xff] %v642
    %675 = vst [vmem:[#allocation3 + $0x58] sm:$0xff] %v645
    %676 = vst [vmem:[#allocation3 + $0x60] sm:$0xff] %v650
    %677 = vst [vmem:[#allocation3 + $0x68] sm:$0xff] %v653
    %678 = vst [vmem:[#allocation3 + $0x70] sm:$0xff] %v658
    %679 = vst [vmem:[#allocation3 + $0x78] sm:$0xff] %v661
    // Predicated region
    $region26: #{tpu_custom_call.1} parent=1 // pred_check
      _
    $region27: #{tpu_custom_call.1} parent=1 // pred_check_branch
      %681 = sbr.rel (0) target = $region29
    $region28: #{tpu_custom_call.1} parent=1 // pred_region
      %s683 = ssub.s32 2048, 2048
      %684 = vsyncadd [#allocation4], %s683
      %s685 = sshll.u32 [#allocation3], 4
      %s686 = int_to_ptr.vmem [resolvable:$true] %s685
      %691 = dma.vmem_to_hbm [thread:$0]  %s686, 2048, %s6, [#allocation4], 128, 128, 8
    $region29: #{tpu_custom_call.1} parent=1 // pred_fallthru
      _
    // Predicated region
    $region30: #{tpu_custom_call.1} parent=1 // pred_check
      _
    $region31: #{tpu_custom_call.1} parent=1 // pred_check_branch
      %693 = sbr.rel (0) target = $region33
    $region32: #{tpu_custom_call.1} parent=1 // pred_region
      %694 = dma.done [#allocation4], 2048
    $region33: #{tpu_custom_call.1} parent=1 // pred_fallthru
      _
    %695 = vsyncpa [#allocation4], 1

</llo_original>
